<compile_context>
chip_gen: v7x
topology: tpu7x:2x2x1
jax: 0.10.0
libtpu: 0.0.40
codegen_flags: <defaults>
</compile_context>

<pallas_src>
import functools

import jax
import jax.numpy as jnp
from jax.experimental import pallas as pl
from jax.experimental.pallas import tpu as pltpu


def qnetwork_kernel(
    s_ref, a_ref,                 # (TB, state_dim), (TB, action_dim)  f32
    w1s_ref, w1a_ref, b1_ref,     # fused layer-1 (bf16 weights), split along K
    w2_ref, b2_ref,               # stacked per-head layer-2: (2, H, H) bf16, (2, H) f32
    w3_ref, b3_ref,               # stacked per-head layer-3: (2, H) f32, (1, 2) f32
    out_ref,                      # (TB, 2): [:, 0] = q1, [:, 1] = q2
):
    H = w2_ref.shape[1]
    wdt = w1s_ref.dtype           # weight dtype (bf16)

    # ---- Layer 1, both heads fused into one (TB, 2H) activation.
    #      s @ W1_s + a @ W1_a  ==  [s | a] @ W1   (no wrapper-side concat).
    #      LHS cast to the weight dtype; MXU accumulates in f32.
    h = jnp.dot(s_ref[...].astype(wdt), w1s_ref[...],
                preferred_element_type=jnp.float32)
    h = h + jnp.dot(a_ref[...].astype(wdt), w1a_ref[...],
                    preferred_element_type=jnp.float32)
    h = jnp.maximum(h + b1_ref[...], 0.0)          # bias/ReLU in f32 (VPU)
    x1 = h[:, :H].astype(wdt)
    x2 = h[:, H:].astype(wdt)

    # ---- Layer 2 (per-head; stacked bf16 weight slab stays VMEM-resident).
    y1 = jnp.maximum(
        jnp.dot(x1, w2_ref[0], preferred_element_type=jnp.float32)
        + b2_ref[0:1, :], 0.0)
    y2 = jnp.maximum(
        jnp.dot(x2, w2_ref[1], preferred_element_type=jnp.float32)
        + b2_ref[1:2, :], 0.0)

    # ---- Layer 3: N=1 "matmul" as VPU multiply + XLU lane reduction, in f32
    #      (avoids two 1/256-lane-utilization MXU passes; v5e-safe f32 VPU math).
    q1 = jnp.sum(y1 * w3_ref[0:1, :], axis=-1, keepdims=True) + b3_ref[:, 0:1]
    q2 = jnp.sum(y2 * w3_ref[1:2, :], axis=-1, keepdims=True) + b3_ref[:, 1:2]

    # Single combined store (one vst path instead of two 1-lane masked stores).
    out_ref[...] = jnp.concatenate([q1, q2], axis=-1).astype(out_ref.dtype)


def init_qnetwork_params(key, state_dim, action_dim, hidden=256, dtype=jnp.float32):
    """PyTorch-style nn.Linear default init (U[-1/sqrt(fan_in), 1/sqrt(fan_in)]).
    Weights stored transposed: (in_features, out_features)."""
    in_dim = state_dim + action_dim
    dims = [
        (in_dim, hidden), (hidden, hidden), (hidden, 1),   # Q1 head
        (in_dim, hidden), (hidden, hidden), (hidden, 1),   # Q2 head
    ]
    params = []
    keys = jax.random.split(key, len(dims) * 2)
    for i, (fan_in, fan_out) in enumerate(dims):
        bound = 1.0 / (fan_in ** 0.5)
        w = jax.random.uniform(keys[2 * i], (fan_in, fan_out), dtype,
                               minval=-bound, maxval=bound)
        b = jax.random.uniform(keys[2 * i + 1], (1, fan_out), dtype,
                               minval=-bound, maxval=bound)
        params.append((w, b))
    return params


def pack_qnetwork_params(params, state_dim, weight_dtype=jnp.bfloat16):
    """One-time packing of the 12 parameter tensors into 7 kernel slabs.

    Layer-1/2 weight slabs are stored in `weight_dtype` (bf16 by default);
    biases and the tiny layer-3 vectors stay f32 (VPU/accumulation path)."""
    (w1a, b1a), (w2a, b2a), (w3a, b3a), (w1b, b1b), (w2b, b2b), (w3b, b3b) = params
    w1f = jnp.concatenate([w1a, w1b], axis=1)                 # (in_dim, 2H)
    return dict(
        w1_s=w1f[:state_dim].astype(weight_dtype),            # (state_dim, 2H)
        w1_a=w1f[state_dim:].astype(weight_dtype),             # (action_dim, 2H)
        b1=jnp.concatenate([b1a, b1b], axis=1).astype(jnp.float32),   # (1, 2H)
        w2=jnp.stack([w2a, w2b], axis=0).astype(weight_dtype),         # (2, H, H)
        b2=jnp.concatenate([b2a, b2b], axis=0).astype(jnp.float32),    # (2, H)
        w3=jnp.stack([w3a[:, 0], w3b[:, 0]], axis=0).astype(jnp.float32),  # (2, H)
        b3=jnp.concatenate([b3a, b3b], axis=1).astype(jnp.float32),    # (1, 2)
    )


@functools.lru_cache(maxsize=1)
def _tensorcores_per_chip():
    """2 TensorCores per chip on v7x (and v4/v5p megacore), 1 on v5e/v6e."""
    try:
        kind = jax.devices()[0].device_kind.lower()
    except Exception:  # pragma: no cover - defensive
        return 1
    return 2 if any(t in kind for t in ("v7", "v5p", "v4")) else 1


def _select_tile(batch, block_b, n_cores):
    """Per-generation batch-tiling policy.

    Single block on 1-TC chips (grid splits are pure ~0.35us/step overhead).
    On 2-TC chips, force >= 2 grid steps once B >= 128 so the 'parallel'
    axis shards rows across both TensorCores."""
    if n_cores >= 2 and batch >= 128:
        tb = -(-batch // 2)            # cdiv(B, 2)
        tb = ((tb + 7) // 8) * 8       # sublane-align
        return min(tb, block_b)
    return min(batch, block_b)


@functools.partial(jax.jit, static_argnames=("block_b",))
def qnetwork_forward(s, a, packed, block_b=2048):
    """Pallas TPU QNetwork.forward(s, a) -> (q1, q2), each (B, 1)."""
    B, state_dim = s.shape
    action_dim = a.shape[1]
    H = packed["w2"].shape[1]
    in_dim = state_dim + action_dim

    TB = _select_tile(B, block_b, _tensorcores_per_chip())
    grid = (pl.cdiv(B, TB),)

    def const_spec(*blk):
        return pl.BlockSpec(blk, lambda i, _n=len(blk): (0,) * _n)

    in_specs = [
        pl.BlockSpec((TB, state_dim), lambda i: (i, 0)),
        pl.BlockSpec((TB, action_dim), lambda i: (i, 0)),
        const_spec(state_dim, 2 * H),
        const_spec(action_dim, 2 * H),
        const_spec(1, 2 * H),
        const_spec(2, H, H),
        const_spec(2, H),
        const_spec(2, H),
        const_spec(1, 2),
    ]
    out_specs = pl.BlockSpec((TB, 2), lambda i: (i, 0))

    w_bytes = packed["w1_s"].dtype.itemsize
    flops = 2 * B * (in_dim * 2 * H + 2 * H * H + 2 * H)
    bytes_accessed = (4 * B * (in_dim + 2)
                      + w_bytes * (in_dim * 2 * H + 2 * H * H)
                      + 4 * (2 * H + 2 * H + 2 * H + 2))
    cost = pl.CostEstimate(flops=int(flops), transcendentals=0,
                           bytes_accessed=int(bytes_accessed))

    out = pl.pallas_call(
        qnetwork_kernel,
        out_shape=jax.ShapeDtypeStruct((B, 2), s.dtype),
        grid=grid,
        in_specs=in_specs,
        out_specs=out_specs,
        compiler_params=pltpu.CompilerParams(
            dimension_semantics=("parallel",),
            # Explicit limit with headroom under v7x's 64 MiB physical VMEM;
            # weights (~0.3 MiB bf16) + (TB, 2H) f32 activations are far below.
            vmem_limit_bytes=48 * 1024 * 1024,
        ),
        cost_estimate=cost,
    )(s, a, packed["w1_s"], packed["w1_a"], packed["b1"],
      packed["w2"], packed["b2"], packed["w3"], packed["b3"])

    return out[:, 0:1], out[:, 1:2]


def qnetwork_ref(s, a, params):
    """Pure-JAX f32 reference (mirrors the PyTorch module)."""
    sa = jnp.concatenate([s, a], axis=-1)
    (w1a, b1a), (w2a, b2a), (w3a, b3a), (w1b, b1b), (w2b, b2b), (w3b, b3b) = params
    x1 = jnp.maximum(sa @ w1a + b1a, 0.0)
    x1 = jnp.maximum(x1 @ w2a + b2a, 0.0)
    q1 = x1 @ w3a + b3a
    x2 = jnp.maximum(sa @ w1b + b1b, 0.0)
    x2 = jnp.maximum(x2 @ w2b + b2b, 0.0)
    q2 = x2 @ w3b + b3b
    return q1, q2


if __name__ == "__main__":
    key = jax.random.PRNGKey(0)
    k_param, k_s, k_a, k_s2, k_a2 = jax.random.split(key, 5)

    # Small example shapes; hidden kept at the module default (256, lane-aligned).
    batch, state_dim, action_dim, hidden = 8, 12, 4, 256

    params = init_qnetwork_params(k_param, state_dim, action_dim, hidden)
    packed = pack_qnetwork_params(params, state_dim)          # bf16 weight slabs

    # bf16 weights -> compare against the f32 reference with a looser tolerance.
    ATOL = RTOL = 2e-2

    # --- Test 1: single-block path (typical small SAC batch).
    s = jax.random.normal(k_s, (batch, state_dim), jnp.float32)
    a = jax.random.normal(k_a, (batch, action_dim), jnp.float32)
    q1, q2 = qnetwork_forward(s, a, packed)
    jax.block_until_ready((q1, q2))
    q1_ref, q2_ref = qnetwork_ref(s, a, params)
    assert q1.shape == (batch, 1) and q2.shape == (batch, 1)
    assert jnp.allclose(q1, q1_ref, atol=ATOL, rtol=RTOL)
    assert jnp.allclose(q2, q2_ref, atol=ATOL, rtol=RTOL)

    # --- Test 2: multi-block path with a partial last block (exercises tiling).
    B2 = 200
    s2 = jax.random.normal(k_s2, (B2, state_dim), jnp.float32)
    a2 = jax.random.normal(k_a2, (B2, action_dim), jnp.float32)
    q1b, q2b = qnetwork_forward(s2, a2, packed, block_b=128)
    jax.block_until_ready((q1b, q2b))
    q1b_ref, q2b_ref = qnetwork_ref(s2, a2, params)
    assert q1b.shape == (B2, 1) and q2b.shape == (B2, 1)
    assert jnp.allclose(q1b, q1b_ref, atol=ATOL, rtol=RTOL)
    assert jnp.allclose(q2b, q2b_ref, atol=ATOL, rtol=RTOL)

    print("KERNEL_OK")
</pallas_src>

<mosaic_0001>
module attributes {stable_mosaic.version = 11 : i64} {
  func.func @qnetwork_kernel(%arg0: i32, %arg1: memref<8x12xf32, #tpu.memory_space<vmem>>, %arg2: memref<8x4xf32, #tpu.memory_space<vmem>>, %arg3: memref<12x512xbf16, #tpu.memory_space<vmem>>, %arg4: memref<4x512xbf16, #tpu.memory_space<vmem>>, %arg5: memref<1x512xf32, #tpu.memory_space<vmem>>, %arg6: memref<2x256x256xbf16, #tpu.memory_space<vmem>>, %arg7: memref<2x256xf32, #tpu.memory_space<vmem>>, %arg8: memref<2x256xf32, #tpu.memory_space<vmem>>, %arg9: memref<1x2xf32, #tpu.memory_space<vmem>>, %arg10: memref<8x2xf32, #tpu.memory_space<vmem>>) attributes {dimension_semantics = [#tpu.dimension_semantics<parallel>], iteration_bounds = array<i64: 1>, scalar_prefetch = 0 : i64, scratch_operands = 0 : i64, tpu.core_type = #tpu.core_type<tc>, window_params = [{transform_indices = @transform_0, window_bounds = array<i64: 8, 12>}, {transform_indices = @transform_1, window_bounds = array<i64: 8, 4>}, {pipeline_mode = #tpu.pipeline_mode<synchronous>, transform_indices = @transform_2, window_bounds = array<i64: 12, 512>}, {pipeline_mode = #tpu.pipeline_mode<synchronous>, transform_indices = @transform_3, window_bounds = array<i64: 4, 512>}, {pipeline_mode = #tpu.pipeline_mode<synchronous>, transform_indices = @transform_4, window_bounds = array<i64: 1, 512>}, {pipeline_mode = #tpu.pipeline_mode<synchronous>, transform_indices = @transform_5, window_bounds = array<i64: 2, 256, 256>}, {pipeline_mode = #tpu.pipeline_mode<synchronous>, transform_indices = @transform_6, window_bounds = array<i64: 2, 256>}, {pipeline_mode = #tpu.pipeline_mode<synchronous>, transform_indices = @transform_7, window_bounds = array<i64: 2, 256>}, {pipeline_mode = #tpu.pipeline_mode<synchronous>, transform_indices = @transform_8, window_bounds = array<i64: 1, 2>}, {transform_indices = @transform_9, window_bounds = array<i64: 8, 2>}]} {
    %c0 = arith.constant 0 : index
    %c0_0 = arith.constant 0 : index
    %0 = vector.load %arg1[%c0, %c0_0] : memref<8x12xf32, #tpu.memory_space<vmem>>, vector<8x12xf32>
    %1 = arith.truncf %0 : vector<8x12xf32> to vector<8x12xbf16>
    %c0_1 = arith.constant 0 : index
    %c0_2 = arith.constant 0 : index
    %2 = vector.load %arg3[%c0_1, %c0_2] : memref<12x512xbf16, #tpu.memory_space<vmem>>, vector<12x512xbf16>
    %cst = arith.constant dense<0.000000e+00> : vector<8x512xf32>
    %3 = tpu.matmul %1, %2, %cst {dimension_numbers = #tpu.dot_dimension_numbers<[1], [0], [0], [1], [0, 0, 1, 1], [], []>} : vector<8x12xbf16>, vector<12x512xbf16>, vector<8x512xf32> -> vector<8x512xf32>
    %c0_3 = arith.constant 0 : index
    %c0_4 = arith.constant 0 : index
    %4 = vector.load %arg2[%c0_3, %c0_4] : memref<8x4xf32, #tpu.memory_space<vmem>>, vector<8x4xf32>
    %5 = arith.truncf %4 : vector<8x4xf32> to vector<8x4xbf16>
    %c0_5 = arith.constant 0 : index
    %c0_6 = arith.constant 0 : index
    %6 = vector.load %arg4[%c0_5, %c0_6] : memref<4x512xbf16, #tpu.memory_space<vmem>>, vector<4x512xbf16>
    %cst_7 = arith.constant dense<0.000000e+00> : vector<8x512xf32>
    %7 = tpu.matmul %5, %6, %cst_7 {dimension_numbers = #tpu.dot_dimension_numbers<[1], [0], [0], [1], [0, 0, 1, 1], [], []>} : vector<8x4xbf16>, vector<4x512xbf16>, vector<8x512xf32> -> vector<8x512xf32>
    %8 = arith.addf %3, %7 : vector<8x512xf32>
    %c0_8 = arith.constant 0 : index
    %c0_9 = arith.constant 0 : index
    %9 = vector.load %arg5[%c0_8, %c0_9] : memref<1x512xf32, #tpu.memory_space<vmem>>, vector<1x512xf32>
    %10 = vector.broadcast %9 : vector<1x512xf32> to vector<8x512xf32>
    %11 = arith.addf %8, %10 : vector<8x512xf32>
    %cst_10 = arith.constant 0.000000e+00 : f32
    %12 = vector.broadcast %cst_10 : f32 to vector<8x512xf32>
    %13 = arith.maximumf %11, %12 : vector<8x512xf32>
    %14 = vector.extract_strided_slice %13 {offsets = [0, 0], sizes = [8, 256], strides = [1, 1]} : vector<8x512xf32> to vector<8x256xf32>
    %15 = arith.truncf %14 : vector<8x256xf32> to vector<8x256xbf16>
    %16 = vector.extract_strided_slice %13 {offsets = [0, 256], sizes = [8, 256], strides = [1, 1]} : vector<8x512xf32> to vector<8x256xf32>
    %17 = arith.truncf %16 : vector<8x256xf32> to vector<8x256xbf16>
    %c0_11 = arith.constant 0 : index
    %c0_12 = arith.constant 0 : index
    %c0_13 = arith.constant 0 : index
    %18 = vector.load %arg6[%c0_11, %c0_12, %c0_13] : memref<2x256x256xbf16, #tpu.memory_space<vmem>>, vector<1x256x256xbf16>
    %19 = vector.shape_cast %18 : vector<1x256x256xbf16> to vector<256x256xbf16>
    %cst_14 = arith.constant dense<0.000000e+00> : vector<8x256xf32>
    %20 = tpu.matmul %15, %19, %cst_14 {dimension_numbers = #tpu.dot_dimension_numbers<[1], [0], [0], [1], [0, 0, 1, 1], [], []>} : vector<8x256xbf16>, vector<256x256xbf16>, vector<8x256xf32> -> vector<8x256xf32>
    %c0_15 = arith.constant 0 : index
    %c0_16 = arith.constant 0 : index
    %21 = vector.load %arg7[%c0_15, %c0_16] : memref<2x256xf32, #tpu.memory_space<vmem>>, vector<1x256xf32>
    %22 = vector.broadcast %21 : vector<1x256xf32> to vector<8x256xf32>
    %23 = arith.addf %20, %22 : vector<8x256xf32>
    %cst_17 = arith.constant 0.000000e+00 : f32
    %24 = vector.broadcast %cst_17 : f32 to vector<8x256xf32>
    %25 = arith.maximumf %23, %24 : vector<8x256xf32>
    %c1 = arith.constant 1 : index
    %c0_18 = arith.constant 0 : index
    %c0_19 = arith.constant 0 : index
    %26 = vector.load %arg6[%c1, %c0_18, %c0_19] : memref<2x256x256xbf16, #tpu.memory_space<vmem>>, vector<1x256x256xbf16>
    %27 = vector.shape_cast %26 : vector<1x256x256xbf16> to vector<256x256xbf16>
    %cst_20 = arith.constant dense<0.000000e+00> : vector<8x256xf32>
    %28 = tpu.matmul %17, %27, %cst_20 {dimension_numbers = #tpu.dot_dimension_numbers<[1], [0], [0], [1], [0, 0, 1, 1], [], []>} : vector<8x256xbf16>, vector<256x256xbf16>, vector<8x256xf32> -> vector<8x256xf32>
    %c1_21 = arith.constant 1 : index
    %c0_22 = arith.constant 0 : index
    %29 = vector.load %arg7[%c1_21, %c0_22] : memref<2x256xf32, #tpu.memory_space<vmem>>, vector<1x256xf32>
    %30 = vector.broadcast %29 : vector<1x256xf32> to vector<8x256xf32>
    %31 = arith.addf %28, %30 : vector<8x256xf32>
    %cst_23 = arith.constant 0.000000e+00 : f32
    %32 = vector.broadcast %cst_23 : f32 to vector<8x256xf32>
    %33 = arith.maximumf %31, %32 : vector<8x256xf32>
    %c0_24 = arith.constant 0 : index
    %c0_25 = arith.constant 0 : index
    %34 = vector.load %arg8[%c0_24, %c0_25] : memref<2x256xf32, #tpu.memory_space<vmem>>, vector<1x256xf32>
    %35 = vector.broadcast %34 : vector<1x256xf32> to vector<8x256xf32>
    %36 = arith.mulf %25, %35 : vector<8x256xf32>
    %cst_26 = arith.constant dense<0.000000e+00> : vector<8xf32>
    %37 = vector.multi_reduction <add>, %36, %cst_26 [1] : vector<8x256xf32> to vector<8xf32>
    %38 = vector.shape_cast %37 : vector<8xf32> to vector<8x1xf32>
    %c0_27 = arith.constant 0 : index
    %c0_28 = arith.constant 0 : index
    %39 = vector.load %arg9[%c0_27, %c0_28] : memref<1x2xf32, #tpu.memory_space<vmem>>, vector<1x1xf32>
    %40 = vector.broadcast %39 : vector<1x1xf32> to vector<8x1xf32>
    %41 = arith.addf %38, %40 : vector<8x1xf32>
    %c1_29 = arith.constant 1 : index
    %c0_30 = arith.constant 0 : index
    %42 = vector.load %arg8[%c1_29, %c0_30] : memref<2x256xf32, #tpu.memory_space<vmem>>, vector<1x256xf32>
    %43 = vector.broadcast %42 : vector<1x256xf32> to vector<8x256xf32>
    %44 = arith.mulf %33, %43 : vector<8x256xf32>
    %cst_31 = arith.constant dense<0.000000e+00> : vector<8xf32>
    %45 = vector.multi_reduction <add>, %44, %cst_31 [1] : vector<8x256xf32> to vector<8xf32>
    %46 = vector.shape_cast %45 : vector<8xf32> to vector<8x1xf32>
    %c0_32 = arith.constant 0 : index
    %c1_33 = arith.constant 1 : index
    %47 = vector.load %arg9[%c0_32, %c1_33] : memref<1x2xf32, #tpu.memory_space<vmem>>, vector<1x1xf32>
    %48 = vector.broadcast %47 : vector<1x1xf32> to vector<8x1xf32>
    %49 = arith.addf %46, %48 : vector<8x1xf32>
    %50 = tpu.concatenate %41, %49 in 1 : vector<8x1xf32>, vector<8x1xf32> -> vector<8x2xf32>
    %c0_34 = arith.constant 0 : index
    %c0_35 = arith.constant 0 : index
    %51 = vector.load %arg10[%c0_34, %c0_35] : memref<8x2xf32, #tpu.memory_space<vmem>>, vector<8x2xf32>
    tpu.vector_store %arg10[%c0_34, %c0_35], %50 {strides = array<i32>} : memref<8x2xf32, #tpu.memory_space<vmem>>, vector<8x2xf32>,
    return
  }
  func.func @transform_0(%arg0: i32) -> (i32, i32) {
    %c0_i32 = arith.constant 0 : i32
    %c0_i32_0 = arith.constant 0 : i32
    return %arg0, %c0_i32 : i32, i32
  }
  func.func @transform_1(%arg0: i32) -> (i32, i32) {
    %c0_i32 = arith.constant 0 : i32
    %c0_i32_0 = arith.constant 0 : i32
    return %arg0, %c0_i32 : i32, i32
  }
  func.func @transform_2(%arg0: i32) -> (i32, i32) {
    %c0_i32 = arith.constant 0 : i32
    %c0_i32_0 = arith.constant 0 : i32
    %c0_i32_1 = arith.constant 0 : i32
    return %c0_i32, %c0_i32_0 : i32, i32
  }
  func.func @transform_3(%arg0: i32) -> (i32, i32) {
    %c0_i32 = arith.constant 0 : i32
    %c0_i32_0 = arith.constant 0 : i32
    %c0_i32_1 = arith.constant 0 : i32
    return %c0_i32, %c0_i32_0 : i32, i32
  }
  func.func @transform_4(%arg0: i32) -> (i32, i32) {
    %c0_i32 = arith.constant 0 : i32
    %c0_i32_0 = arith.constant 0 : i32
    %c0_i32_1 = arith.constant 0 : i32
    return %c0_i32, %c0_i32_0 : i32, i32
  }
  func.func @transform_5(%arg0: i32) -> (i32, i32, i32) {
    %c0_i32 = arith.constant 0 : i32
    %c0_i32_0 = arith.constant 0 : i32
    %c0_i32_1 = arith.constant 0 : i32
    %c0_i32_2 = arith.constant 0 : i32
    return %c0_i32, %c0_i32_0, %c0_i32_1 : i32, i32, i32
  }
  func.func @transform_6(%arg0: i32) -> (i32, i32) {
    %c0_i32 = arith.constant 0 : i32
    %c0_i32_0 = arith.constant 0 : i32
    %c0_i32_1 = arith.constant 0 : i32
    return %c0_i32, %c0_i32_0 : i32, i32
  }
  func.func @transform_7(%arg0: i32) -> (i32, i32) {
    %c0_i32 = arith.constant 0 : i32
    %c0_i32_0 = arith.constant 0 : i32
    %c0_i32_1 = arith.constant 0 : i32
    return %c0_i32, %c0_i32_0 : i32, i32
  }
  func.func @transform_8(%arg0: i32) -> (i32, i32) {
    %c0_i32 = arith.constant 0 : i32
    %c0_i32_0 = arith.constant 0 : i32
    %c0_i32_1 = arith.constant 0 : i32
    return %c0_i32, %c0_i32_0 : i32, i32
  }
  func.func @transform_9(%arg0: i32) -> (i32, i32) {
    %c0_i32 = arith.constant 0 : i32
    %c0_i32_0 = arith.constant 0 : i32
    return %arg0, %c0_i32 : i32, i32
  }
}

</mosaic_0001>

<llo_original>
// kernel: qnetwork_forward.1
$region0: #{qnetwork_forward.1}
  #allocation0 [shape = 'u32[]', space=smem, size = 0x4, offset = 0x4, fixed_abs, tag = 'smem constant byte address 0x4 - core index']
  #allocation1 [shape = 'u32[144,128]{1,0:T(1,128)}', space=vmem, size = 0x12000, scoped, tag = 'internal scratch']
  %s0 = inlined_call_operand.hbm [shape: f32[8,12], index: 0, kind: input, shape index: {}]
  %s1 = inlined_call_operand.vmem [shape: f32[8,4], index: 1, kind: input, shape index: {}]
  %s2 = inlined_call_operand.vmem [shape: bf16[12,512], index: 2, kind: input, shape index: {}]
  %s3 = inlined_call_operand.hbm [shape: bf16[4,512], index: 3, kind: input, shape index: {}]
  %s4 = inlined_call_operand.hbm [shape: f32[1,512], index: 4, kind: input, shape index: {}]
  %s5 = inlined_call_operand.hbm [shape: bf16[2,256,256], index: 5, kind: input, shape index: {}]
  %s6 = inlined_call_operand.hbm [shape: f32[2,256], index: 6, kind: input, shape index: {}]
  %s7 = inlined_call_operand.vmem [shape: f32[2,256], index: 7, kind: input, shape index: {}]
  %s8 = inlined_call_operand.vmem [shape: f32[1,2], index: 8, kind: input, shape index: {}]
  %s9 = inlined_call_operand.vmem [shape: f32[8,2], index: 9, kind: output, shape index: {}]
  %s10 = sld [smem:[#allocation0]]
  $region66: #{qnetwork_forward.1} parent=0
    _
  %s12 = ssub.s32 1, %s10
  %s13 = scalar_select 0, %s12, %s10
  $region1: #{qnetwork_forward.1} parent=0
    #allocation2 [shape = 'u8[4096]{0}', space=vmem, size = 0x1000, scoped, tag = 'input window, operand 0, single buffered']
    #allocation3 [shape = 's32[1]{0}', space=sflag, size = 0x4, scoped, tag = 'scoped memory for qnetwork_forward.1']
    #allocation4 [shape = 'u8[4096]{0}', space=vmem, size = 0x1000, scoped, tag = 'input window, operand 3, single buffered']
    #allocation5 [shape = 's32[1]{0}', space=sflag, size = 0x4, scoped, tag = 'scoped memory for qnetwork_forward.1']
    #allocation6 [shape = 'u8[2048]{0}', space=vmem, size = 0x800, scoped, tag = 'input window, operand 4, single buffered']
    #allocation7 [shape = 'u8[262144]{0}', space=vmem, size = 0x40000, scoped, tag = 'input window, operand 5, single buffered']
    #allocation8 [shape = 's32[1]{0}', space=sflag, size = 0x4, scoped, tag = 'scoped memory for qnetwork_forward.1']
    #allocation9 [shape = 'u8[2048]{0}', space=vmem, size = 0x800, scoped, tag = 'input window, operand 6, single buffered']
    %14 = vsyncpa [#allocation3], 0
    %15 = vsyncpa [#allocation5], 0
    %16 = vsyncpa [#allocation8], 0
    // Predicated region
    $region2: #{qnetwork_forward.1} parent=1 // pred_check
      _
    $region3: #{qnetwork_forward.1} parent=1 // pred_check_branch
      %18 = sbr.rel (0) target = $region5
    $region4: #{qnetwork_forward.1} parent=1 // pred_region
      %s20 = ssub.s32 128, 128
      %21 = vsyncadd [#allocation3], %s20
      %s23 = sshll.u32 [#allocation2], 4
      %s24 = int_to_ptr.vmem [resolvable:$true] %s23
      %26 = dma.hbm_to_vmem [thread:$0]  %s0, 128, %s24, [#allocation3]
    $region5: #{qnetwork_forward.1} parent=1 // pred_fallthru
      _
    // Predicated region
    $region6: #{qnetwork_forward.1} parent=1 // pred_check
      _
    $region7: #{qnetwork_forward.1} parent=1 // pred_check_branch
      %28 = sbr.rel (0) target = $region9
    $region8: #{qnetwork_forward.1} parent=1 // pred_region
      _
    $region9: #{qnetwork_forward.1} parent=1 // pred_fallthru
      _
    // Predicated region
    $region10: #{qnetwork_forward.1} parent=1 // pred_check
      _
    $region11: #{qnetwork_forward.1} parent=1 // pred_check_branch
      %30 = sbr.rel (0) target = $region13
    $region12: #{qnetwork_forward.1} parent=1 // pred_region
      _
    $region13: #{qnetwork_forward.1} parent=1 // pred_fallthru
      _
    // Predicated region
    $region14: #{qnetwork_forward.1} parent=1 // pred_check
      _
    $region15: #{qnetwork_forward.1} parent=1 // pred_check_branch
      %32 = sbr.rel (0) target = $region17
    $region16: #{qnetwork_forward.1} parent=1 // pred_region
      %s34 = ssub.s32 128, 128
      %35 = vsyncadd [#allocation5], %s34
      %s37 = sshll.u32 [#allocation4], 4
      %s38 = int_to_ptr.vmem [resolvable:$true] %s37
      %40 = dma.hbm_to_vmem [thread:$0]  %s3, 128, %s38, [#allocation5]
    $region17: #{qnetwork_forward.1} parent=1 // pred_fallthru
      _
    // Predicated region
    $region18: #{qnetwork_forward.1} parent=1 // pred_check
      _
    $region19: #{qnetwork_forward.1} parent=1 // pred_check_branch
      %42 = sbr.rel (0) target = $region21
    $region20: #{qnetwork_forward.1} parent=1 // pred_region
      %s44 = ssub.s32 64, 64
      %45 = vsyncadd [#allocation5], %s44
      %s47 = sshll.u32 [#allocation6], 4
      %s48 = int_to_ptr.vmem [resolvable:$true] %s47
      %50 = dma.hbm_to_vmem [thread:$0]  %s4, 64, %s48, [#allocation5]
    $region21: #{qnetwork_forward.1} parent=1 // pred_fallthru
      _
    // Predicated region
    $region22: #{qnetwork_forward.1} parent=1 // pred_check
      _
    $region23: #{qnetwork_forward.1} parent=1 // pred_check_branch
      %52 = sbr.rel (0) target = $region25
    $region24: #{qnetwork_forward.1} parent=1 // pred_region
      %s54 = ssub.s32 8192, 8192
      %55 = vsyncadd [#allocation8], %s54
      %s56 = sshll.u32 [#allocation7], 4
      %s57 = int_to_ptr.vmem [resolvable:$true] %s56
      %62 = dma.hbm_to_vmem [thread:$0]  %s5, 8192, %s57, [#allocation8], 128, 128, 8
    $region25: #{qnetwork_forward.1} parent=1 // pred_fallthru
      _
    // Predicated region
    $region26: #{qnetwork_forward.1} parent=1 // pred_check
      _
    $region27: #{qnetwork_forward.1} parent=1 // pred_check_branch
      %64 = sbr.rel (0) target = $region29
    $region28: #{qnetwork_forward.1} parent=1 // pred_region
      %s66 = ssub.s32 64, 64
      %67 = vsyncadd [#allocation8], %s66
      %s69 = sshll.u32 [#allocation9], 4
      %s70 = int_to_ptr.vmem [resolvable:$true] %s69
      %72 = dma.hbm_to_vmem [thread:$0]  %s6, 64, %s70, [#allocation8]
    $region29: #{qnetwork_forward.1} parent=1 // pred_fallthru
      _
    // Predicated region
    $region30: #{qnetwork_forward.1} parent=1 // pred_check
      _
    $region31: #{qnetwork_forward.1} parent=1 // pred_check_branch
      %74 = sbr.rel (0) target = $region33
    $region32: #{qnetwork_forward.1} parent=1 // pred_region
      _
    $region33: #{qnetwork_forward.1} parent=1 // pred_fallthru
      _
    // Predicated region
    $region34: #{qnetwork_forward.1} parent=1 // pred_check
      _
    $region35: #{qnetwork_forward.1} parent=1 // pred_check_branch
      %76 = sbr.rel (0) target = $region37
    $region36: #{qnetwork_forward.1} parent=1 // pred_region
      _
    $region37: #{qnetwork_forward.1} parent=1 // pred_fallthru
      _
    // Predicated region
    $region38: #{qnetwork_forward.1} parent=1 // pred_check
      _
    $region39: #{qnetwork_forward.1} parent=1 // pred_check_branch
      %78 = sbr.rel (0) target = $region41
    $region40: #{qnetwork_forward.1} parent=1 // pred_region
      %79 = dma.done [#allocation3], 128
    $region41: #{qnetwork_forward.1} parent=1 // pred_fallthru
      _
    // Predicated region
    $region42: #{qnetwork_forward.1} parent=1 // pred_check
      _
    $region43: #{qnetwork_forward.1} parent=1 // pred_check_branch
      %81 = sbr.rel (0) target = $region45
    $region44: #{qnetwork_forward.1} parent=1 // pred_region
      %82 = dma.done [#allocation5], 128
    $region45: #{qnetwork_forward.1} parent=1 // pred_fallthru
      _
    // Predicated region
    $region46: #{qnetwork_forward.1} parent=1 // pred_check
      _
    $region47: #{qnetwork_forward.1} parent=1 // pred_check_branch
      %84 = sbr.rel (0) target = $region49
    $region48: #{qnetwork_forward.1} parent=1 // pred_region
      %85 = dma.done [#allocation5], 64
    $region49: #{qnetwork_forward.1} parent=1 // pred_fallthru
      _
    // Predicated region
    $region50: #{qnetwork_forward.1} parent=1 // pred_check
      _
    $region51: #{qnetwork_forward.1} parent=1 // pred_check_branch
      %87 = sbr.rel (0) target = $region53
    $region52: #{qnetwork_forward.1} parent=1 // pred_region
      %88 = dma.done [#allocation8], 8192
    $region53: #{qnetwork_forward.1} parent=1 // pred_fallthru
      _
    // Predicated region
    $region54: #{qnetwork_forward.1} parent=1 // pred_check
      _
    $region55: #{qnetwork_forward.1} parent=1 // pred_check_branch
      %90 = sbr.rel (0) target = $region57
    $region56: #{qnetwork_forward.1} parent=1 // pred_region
      %91 = dma.done [#allocation8], 64
    $region57: #{qnetwork_forward.1} parent=1 // pred_fallthru
      _
    %v93 = vld [vmem:[#allocation2] sm:$0xff]
    %v94 = vpack.c.bf16 %v93, %v93
    %v95 = vld [vmem:[%s2] sm:$0xff]
    %v96 = vld [vmem:[%s2 + $0x8] sm:$0xff]
    %v97 = vld [vmem:[%s2 + $0x10] sm:$0x33]
    %v98 = vld [vmem:[%s2 + $0x18] sm:$0x33]
    %v99 = vld [vmem:[%s1] sm:$0xff]
    %v100 = vpack.c.bf16 %v99, %v99
    %v101 = vld [vmem:[#allocation4] sm:$0xff]
    %v103 = vcombine.high %v101, %v101
    %v105 = vunpack.c.l.s4 1983009808
    %v106 = vunpack.c.0.s8 %v105
    %v107 = vlaneseq
    %v108 = vshrl.u32 %v107, 7
    %v109 = vsub.s32 %v106, %v108
    %v110 = vrot.slane %v101, %v109
    %v112 = vunpack.c.l.s4 1983009808
    %v113 = vunpack.c.0.s8 %v112
    %v114 = vlaneseq
    %v115 = vshrl.u32 %v114, 7
    %v116 = vsub.s32 %v113, %v115
    %v117 = vrot.slane %v103, %v116
    %v118 = vcombine.high %v110, %v110
    %v119 = vcombine.high %v117, %v117
    %vm120 = vcmask 31744
    %v122 = vsel %vm120, %v100, 0
    %vm124 = vcmask 1041408
    %v126 = vsel %vm124, %v110, 0
    %v129 = vsel %vm124, %v118, 0
    %v132 = vsel %vm124, %v117, 0
    %v135 = vsel %vm124, %v119, 0
    %137 = vmatprep.subr.bf16.mxu0 %v129
    %138 = vmatpush1.bf16.msra.mxu0 %v126
    %139 = vmatprep.subr.bf16.mxu0 0
    %140 = vmatpush1.bf16.msra.mxu0 0
    %141 = vmatprep.subr.bf16.mxu0 0
    %142 = vmatpush1.bf16.msra.mxu0 0
    %143 = vmatprep.subr.bf16.mxu0 0
    %144 = vmatpush1.bf16.msra.mxu0 0
    %145 = vmatprep.subr.bf16.mxu0 0
    %146 = vmatpush1.bf16.msra.mxu0 0
    %147 = vmatprep.subr.bf16.mxu0 0
    %148 = vmatpush1.bf16.msra.mxu0 0
    %149 = vmatprep.subr.bf16.mxu0 0
    %150 = vmatpush1.bf16.msra.mxu0 0
    %151 = vmatprep.subr.bf16.mxu0 0
    %152 = vmatpush1.bf16.msra.mxu0 0
    %153 = vmatprep.subr.bf16.mxu0 0
    %154 = vmatpush1.bf16.msra.mxu0 0
    %155 = vmatprep.subr.bf16.mxu0 0
    %156 = vmatpush1.bf16.msra.mxu0 0
    %157 = vmatprep.subr.bf16.mxu0 0
    %158 = vmatpush1.bf16.msra.mxu0 0
    %159 = vmatprep.subr.bf16.mxu0 0
    %160 = vmatpush1.bf16.msra.mxu0 0
    %161 = vmatprep.subr.bf16.mxu0 0
    %162 = vmatpush1.bf16.msra.mxu0 0
    %163 = vmatprep.subr.bf16.mxu0 0
    %164 = vmatpush1.bf16.msra.mxu0 0
    %165 = vmatprep.subr.bf16.mxu0 0
    %166 = vmatpush1.bf16.msra.mxu0 0
    %167 = vmatprep.subr.bf16.mxu0 0
    %168 = vmatpush1.bf16.msra.mxu0 0
    %169 = vmatprep.mubr.bf16.mxu0 0
    %170 = vmatmul.mubr.bf16.gmra.mrb[0].mxu0 %v122
    %v171 = vpop.f32.mrb[0].mxu0
    %v172 = vadd.f32 0.0, %v171
    %v173 = vpop.f32.mrb[0].mxu0
    %v174 = vadd.f32 0.0, %v173
    %v175 = vpop.f32.mrb[0].mxu0
    %v176 = vpop.f32.mrb[0].mxu0
    %177 = vdwg.mxu0
    %178 = vmatprep.subr.bf16.mxu0 %v135
    %179 = vmatpush1.bf16.msra.mxu0 %v132
    %180 = vmatprep.subr.bf16.mxu0 0
    %181 = vmatpush1.bf16.msra.mxu0 0
    %182 = vmatprep.subr.bf16.mxu0 0
    %183 = vmatpush1.bf16.msra.mxu0 0
    %184 = vmatprep.subr.bf16.mxu0 0
    %185 = vmatpush1.bf16.msra.mxu0 0
    %186 = vmatprep.subr.bf16.mxu0 0
    %187 = vmatpush1.bf16.msra.mxu0 0
    %188 = vmatprep.subr.bf16.mxu0 0
    %189 = vmatpush1.bf16.msra.mxu0 0
    %190 = vmatprep.subr.bf16.mxu0 0
    %191 = vmatpush1.bf16.msra.mxu0 0
    %192 = vmatprep.subr.bf16.mxu0 0
    %193 = vmatpush1.bf16.msra.mxu0 0
    %194 = vmatprep.subr.bf16.mxu0 0
    %195 = vmatpush1.bf16.msra.mxu0 0
    %196 = vmatprep.subr.bf16.mxu0 0
    %197 = vmatpush1.bf16.msra.mxu0 0
    %198 = vmatprep.subr.bf16.mxu0 0
    %199 = vmatpush1.bf16.msra.mxu0 0
    %200 = vmatprep.subr.bf16.mxu0 0
    %201 = vmatpush1.bf16.msra.mxu0 0
    %202 = vmatprep.subr.bf16.mxu0 0
    %203 = vmatpush1.bf16.msra.mxu0 0
    %204 = vmatprep.subr.bf16.mxu0 0
    %205 = vmatpush1.bf16.msra.mxu0 0
    %206 = vmatprep.subr.bf16.mxu0 0
    %207 = vmatpush1.bf16.msra.mxu0 0
    %208 = vmatprep.subr.bf16.mxu0 0
    %209 = vmatpush1.bf16.msra.mxu0 0
    %210 = vmatprep.mubr.bf16.mxu0 0
    %211 = vmatmul.mubr.bf16.gmra.mrb[0].mxu0 %v122
    %v212 = vpop.f32.mrb[0].mxu0
    %v213 = vadd.f32 0.0, %v212
    %v214 = vpop.f32.mrb[0].mxu0
    %v215 = vadd.f32 0.0, %v214
    %v216 = vpop.f32.mrb[0].mxu0
    %v217 = vpop.f32.mrb[0].mxu0
    %218 = vdwg.mxu0
    %v223 = vunpack.c.l.b16 %v95
    %v224 = vunpack.c.h.b16 %v95
    %v225 = vunpack.c.l.b16 %v96
    %v226 = vunpack.c.h.b16 %v96
    %v227 = vunpack.c.l.b16 %v97
    %v228 = vunpack.c.h.b16 %v97
    %v229 = vunpack.c.l.b16 %v98
    %v230 = vunpack.c.h.b16 %v98
    %v231 = vpack.c.b16 %v227, %v223
    %v232 = vpack.c.b16 %v228, %v224
    %v233 = vpack.c.b16 %v229, %v225
    %v234 = vpack.c.b16 %v230, %v226
    %vm235 = vcmask 97280
    %v237 = vsel %vm235, %v94, 0
    %vm239 = vcmask 1045504
    %v241 = vsel %vm239, %v231, 0
    %v244 = vsel %vm239, %v232, 0
    %v247 = vsel %vm239, %v233, 0
    %v250 = vsel %vm239, %v234, 0
    %252 = vmatprep.subr.bf16.mxu0 %v244
    %253 = vmatpush1.bf16.msra.mxu0 %v241
    %254 = vmatprep.subr.bf16.mxu0 0
    %255 = vmatpush1.bf16.msra.mxu0 0
    %256 = vmatprep.subr.bf16.mxu0 0
    %257 = vmatpush1.bf16.msra.mxu0 0
    %258 = vmatprep.subr.bf16.mxu0 0
    %259 = vmatpush1.bf16.msra.mxu0 0
    %260 = vmatprep.subr.bf16.mxu0 0
    %261 = vmatpush1.bf16.msra.mxu0 0
    %262 = vmatprep.subr.bf16.mxu0 0
    %263 = vmatpush1.bf16.msra.mxu0 0
    %264 = vmatprep.subr.bf16.mxu0 0
    %265 = vmatpush1.bf16.msra.mxu0 0
    %266 = vmatprep.subr.bf16.mxu0 0
    %267 = vmatpush1.bf16.msra.mxu0 0
    %268 = vmatprep.subr.bf16.mxu0 0
    %269 = vmatpush1.bf16.msra.mxu0 0
    %270 = vmatprep.subr.bf16.mxu0 0
    %271 = vmatpush1.bf16.msra.mxu0 0
    %272 = vmatprep.subr.bf16.mxu0 0
    %273 = vmatpush1.bf16.msra.mxu0 0
    %274 = vmatprep.subr.bf16.mxu0 0
    %275 = vmatpush1.bf16.msra.mxu0 0
    %276 = vmatprep.subr.bf16.mxu0 0
    %277 = vmatpush1.bf16.msra.mxu0 0
    %278 = vmatprep.subr.bf16.mxu0 0
    %279 = vmatpush1.bf16.msra.mxu0 0
    %280 = vmatprep.subr.bf16.mxu0 0
    %281 = vmatpush1.bf16.msra.mxu0 0
    %282 = vmatprep.subr.bf16.mxu0 0
    %283 = vmatpush1.bf16.msra.mxu0 0
    %284 = vmatprep.mubr.bf16.mxu0 0
    %285 = vmatmul.mubr.bf16.gmra.mrb[0].mxu0 %v237
    %v286 = vpop.f32.mrb[0].mxu0
    %v287 = vadd.f32 %v172, %v286
    %v288 = vpop.f32.mrb[0].mxu0
    %v289 = vadd.f32 %v174, %v288
    %v290 = vpop.f32.mrb[0].mxu0
    %v291 = vpop.f32.mrb[0].mxu0
    %292 = vdwg.mxu0
    %293 = vmatprep.subr.bf16.mxu0 %v250
    %294 = vmatpush1.bf16.msra.mxu0 %v247
    %295 = vmatprep.subr.bf16.mxu0 0
    %296 = vmatpush1.bf16.msra.mxu0 0
    %297 = vmatprep.subr.bf16.mxu0 0
    %298 = vmatpush1.bf16.msra.mxu0 0
    %299 = vmatprep.subr.bf16.mxu0 0
    %300 = vmatpush1.bf16.msra.mxu0 0
    %301 = vmatprep.subr.bf16.mxu0 0
    %302 = vmatpush1.bf16.msra.mxu0 0
    %303 = vmatprep.subr.bf16.mxu0 0
    %304 = vmatpush1.bf16.msra.mxu0 0
    %305 = vmatprep.subr.bf16.mxu0 0
    %306 = vmatpush1.bf16.msra.mxu0 0
    %307 = vmatprep.subr.bf16.mxu0 0
    %308 = vmatpush1.bf16.msra.mxu0 0
    %309 = vmatprep.subr.bf16.mxu0 0
    %310 = vmatpush1.bf16.msra.mxu0 0
    %311 = vmatprep.subr.bf16.mxu0 0
    %312 = vmatpush1.bf16.msra.mxu0 0
    %313 = vmatprep.subr.bf16.mxu0 0
    %314 = vmatpush1.bf16.msra.mxu0 0
    %315 = vmatprep.subr.bf16.mxu0 0
    %316 = vmatpush1.bf16.msra.mxu0 0
    %317 = vmatprep.subr.bf16.mxu0 0
    %318 = vmatpush1.bf16.msra.mxu0 0
    %319 = vmatprep.subr.bf16.mxu0 0
    %320 = vmatpush1.bf16.msra.mxu0 0
    %321 = vmatprep.subr.bf16.mxu0 0
    %322 = vmatpush1.bf16.msra.mxu0 0
    %323 = vmatprep.subr.bf16.mxu0 0
    %324 = vmatpush1.bf16.msra.mxu0 0
    %325 = vmatprep.mubr.bf16.mxu0 0
    %326 = vmatmul.mubr.bf16.gmra.mrb[0].mxu0 %v237
    %v327 = vpop.f32.mrb[0].mxu0
    %v328 = vadd.f32 %v213, %v327
    %v329 = vpop.f32.mrb[0].mxu0
    %v330 = vadd.f32 %v215, %v329
    %v331 = vpop.f32.mrb[0].mxu0
    %v332 = vpop.f32.mrb[0].mxu0
    %333 = vdwg.mxu0
    %v334 = vld [vmem:[#allocation6] sm:$0xf]
    %v336 = vlaneseq
    %v337 = vshrl.u32 %v336, 7
    %v338 = vsub.s32 0, %v337
    %v339 = vrot.slane %v334, %v338
    %v340 = vlaneseq
    %v341 = vshrl.u32 %v340, 7
    %v342 = vsub.s32 1, %v341
    %v343 = vrot.slane %v334, %v342
    %v344 = vlaneseq
    %v345 = vshrl.u32 %v344, 7
    %v346 = vsub.s32 2, %v345
    %v347 = vrot.slane %v334, %v346
    %v348 = vlaneseq
    %v349 = vshrl.u32 %v348, 7
    %v350 = vsub.s32 3, %v349
    %v351 = vrot.slane %v334, %v350
    %v356 = vadd.f32 %v287, %v339
    %v357 = vadd.f32 %v289, %v343
    %v358 = vadd.f32 %v328, %v347
    %v359 = vadd.f32 %v330, %v351
    %v360 = vmax.f32 %v356, 0.0
    %v361 = vmax.f32 %v357, 0.0
    %v362 = vmax.f32 %v358, 0.0
    %v363 = vmax.f32 %v359, 0.0
    %v364 = vpack.c.bf16 %v360, %v360
    %v365 = vpack.c.bf16 %v361, %v361
    %v366 = vpack.c.bf16 %v362, %v362
    %v367 = vpack.c.bf16 %v363, %v363
    %v368 = vld [vmem:[#allocation7] sm:$0xff]
    %v369 = vld [vmem:[#allocation7 + $0x8] sm:$0xff]
    %v370 = vld [vmem:[#allocation7 + $0x10] sm:$0xff]
    %v371 = vld [vmem:[#allocation7 + $0x18] sm:$0xff]
    %v372 = vld [vmem:[#allocation7 + $0x20] sm:$0xff]
    %v373 = vld [vmem:[#allocation7 + $0x28] sm:$0xff]
    %v374 = vld [vmem:[#allocation7 + $0x30] sm:$0xff]
    %v375 = vld [vmem:[#allocation7 + $0x38] sm:$0xff]
    %v376 = vld [vmem:[#allocation7 + $0x40] sm:$0xff]
    %v377 = vld [vmem:[#allocation7 + $0x48] sm:$0xff]
    %v378 = vld [vmem:[#allocation7 + $0x50] sm:$0xff]
    %v379 = vld [vmem:[#allocation7 + $0x58] sm:$0xff]
    %v380 = vld [vmem:[#allocation7 + $0x60] sm:$0xff]
    %v381 = vld [vmem:[#allocation7 + $0x68] sm:$0xff]
    %v382 = vld [vmem:[#allocation7 + $0x70] sm:$0xff]
    %v383 = vld [vmem:[#allocation7 + $0x78] sm:$0xff]
    %v384 = vld [vmem:[#allocation7 + $0x80] sm:$0xff]
    %v385 = vld [vmem:[#allocation7 + $0x88] sm:$0xff]
    %v386 = vld [vmem:[#allocation7 + $0x90] sm:$0xff]
    %v387 = vld [vmem:[#allocation7 + $0x98] sm:$0xff]
    %v388 = vld [vmem:[#allocation7 + $0xa0] sm:$0xff]
    %v389 = vld [vmem:[#allocation7 + $0xa8] sm:$0xff]
    %v390 = vld [vmem:[#allocation7 + $0xb0] sm:$0xff]
    %v391 = vld [vmem:[#allocation7 + $0xb8] sm:$0xff]
    %v392 = vld [vmem:[#allocation7 + $0xc0] sm:$0xff]
    %v393 = vld [vmem:[#allocation7 + $0xc8] sm:$0xff]
    %v394 = vld [vmem:[#allocation7 + $0xd0] sm:$0xff]
    %v395 = vld [vmem:[#allocation7 + $0xd8] sm:$0xff]
    %v396 = vld [vmem:[#allocation7 + $0xe0] sm:$0xff]
    %v397 = vld [vmem:[#allocation7 + $0xe8] sm:$0xff]
    %v398 = vld [vmem:[#allocation7 + $0xf0] sm:$0xff]
    %v399 = vld [vmem:[#allocation7 + $0xf8] sm:$0xff]
    %v400 = vld [vmem:[#allocation9] ss:$2 sm:$0x3]
    %v402 = vlaneseq
    %v403 = vshrl.u32 %v402, 7
    %v404 = vsub.s32 0, %v403
    %v405 = vrot.slane %v400, %v404
    %v406 = vlaneseq
    %v407 = vshrl.u32 %v406, 7
    %v408 = vsub.s32 1, %v407
    %v409 = vrot.slane %v400, %v408
    %v444 = vunpack.c.l.b16 %v368
    %v445 = vunpack.c.h.b16 %v368
    %v446 = vunpack.c.l.b16 %v369
    %v447 = vunpack.c.h.b16 %v369
    %v448 = vunpack.c.l.b16 %v370
    %v449 = vunpack.c.h.b16 %v370
    %v450 = vunpack.c.l.b16 %v371
    %v451 = vunpack.c.h.b16 %v371
    %v452 = vunpack.c.l.b16 %v372
    %v453 = vunpack.c.h.b16 %v372
    %v454 = vunpack.c.l.b16 %v373
    %v455 = vunpack.c.h.b16 %v373
    %v456 = vunpack.c.l.b16 %v374
    %v457 = vunpack.c.h.b16 %v374
    %v458 = vunpack.c.l.b16 %v375
    %v459 = vunpack.c.h.b16 %v375
    %v460 = vunpack.c.l.b16 %v376
    %v461 = vunpack.c.h.b16 %v376
    %v462 = vunpack.c.l.b16 %v377
    %v463 = vunpack.c.h.b16 %v377
    %v464 = vunpack.c.l.b16 %v378
    %v465 = vunpack.c.h.b16 %v378
    %v466 = vunpack.c.l.b16 %v379
    %v467 = vunpack.c.h.b16 %v379
    %v468 = vunpack.c.l.b16 %v380
    %v469 = vunpack.c.h.b16 %v380
    %v470 = vunpack.c.l.b16 %v381
    %v471 = vunpack.c.h.b16 %v381
    %v472 = vunpack.c.l.b16 %v382
    %v473 = vunpack.c.h.b16 %v382
    %v474 = vunpack.c.l.b16 %v383
    %v475 = vunpack.c.h.b16 %v383
    %v476 = vunpack.c.l.b16 %v384
    %v477 = vunpack.c.h.b16 %v384
    %v478 = vunpack.c.l.b16 %v385
    %v479 = vunpack.c.h.b16 %v385
    %v480 = vunpack.c.l.b16 %v386
    %v481 = vunpack.c.h.b16 %v386
    %v482 = vunpack.c.l.b16 %v387
    %v483 = vunpack.c.h.b16 %v387
    %v484 = vunpack.c.l.b16 %v388
    %v485 = vunpack.c.h.b16 %v388
    %v486 = vunpack.c.l.b16 %v389
    %v487 = vunpack.c.h.b16 %v389
    %v488 = vunpack.c.l.b16 %v390
    %v489 = vunpack.c.h.b16 %v390
    %v490 = vunpack.c.l.b16 %v391
    %v491 = vunpack.c.h.b16 %v391
    %v492 = vunpack.c.l.b16 %v392
    %v493 = vunpack.c.h.b16 %v392
    %v494 = vunpack.c.l.b16 %v393
    %v495 = vunpack.c.h.b16 %v393
    %v496 = vunpack.c.l.b16 %v394
    %v497 = vunpack.c.h.b16 %v394
    %v498 = vunpack.c.l.b16 %v395
    %v499 = vunpack.c.h.b16 %v395
    %v500 = vunpack.c.l.b16 %v396
    %v501 = vunpack.c.h.b16 %v396
    %v502 = vunpack.c.l.b16 %v397
    %v503 = vunpack.c.h.b16 %v397
    %v504 = vunpack.c.l.b16 %v398
    %v505 = vunpack.c.h.b16 %v398
    %v506 = vunpack.c.l.b16 %v399
    %v507 = vunpack.c.h.b16 %v399
    %v508 = vpack.c.b16 %v446, %v444
    %v509 = vpack.c.b16 %v447, %v445
    %v510 = vpack.c.b16 %v450, %v448
    %v511 = vpack.c.b16 %v451, %v449
    %v512 = vpack.c.b16 %v454, %v452
    %v513 = vpack.c.b16 %v455, %v453
    %v514 = vpack.c.b16 %v458, %v456
    %v515 = vpack.c.b16 %v459, %v457
    %v516 = vpack.c.b16 %v462, %v460
    %v517 = vpack.c.b16 %v463, %v461
    %v518 = vpack.c.b16 %v466, %v464
    %v519 = vpack.c.b16 %v467, %v465
    %v520 = vpack.c.b16 %v470, %v468
    %v521 = vpack.c.b16 %v471, %v469
    %v522 = vpack.c.b16 %v474, %v472
    %v523 = vpack.c.b16 %v475, %v473
    %v524 = vpack.c.b16 %v478, %v476
    %v525 = vpack.c.b16 %v479, %v477
    %v526 = vpack.c.b16 %v482, %v480
    %v527 = vpack.c.b16 %v483, %v481
    %v528 = vpack.c.b16 %v486, %v484
    %v529 = vpack.c.b16 %v487, %v485
    %v530 = vpack.c.b16 %v490, %v488
    %v531 = vpack.c.b16 %v491, %v489
    %v532 = vpack.c.b16 %v494, %v492
    %v533 = vpack.c.b16 %v495, %v493
    %v534 = vpack.c.b16 %v498, %v496
    %v535 = vpack.c.b16 %v499, %v497
    %v536 = vpack.c.b16 %v502, %v500
    %v537 = vpack.c.b16 %v503, %v501
    %v538 = vpack.c.b16 %v506, %v504
    %v539 = vpack.c.b16 %v507, %v505
    %572 = vmatprep.subr.bf16.mxu0 %v509
    %573 = vmatpush1.bf16.msra.mxu0 %v508
    %574 = vmatprep.subr.bf16.mxu0 %v511
    %575 = vmatpush1.bf16.msra.mxu0 %v510
    %576 = vmatprep.subr.bf16.mxu0 %v513
    %577 = vmatpush1.bf16.msra.mxu0 %v512
    %578 = vmatprep.subr.bf16.mxu0 %v515
    %579 = vmatpush1.bf16.msra.mxu0 %v514
    %580 = vmatprep.subr.bf16.mxu0 %v517
    %581 = vmatpush1.bf16.msra.mxu0 %v516
    %582 = vmatprep.subr.bf16.mxu0 %v519
    %583 = vmatpush1.bf16.msra.mxu0 %v518
    %584 = vmatprep.subr.bf16.mxu0 %v521
    %585 = vmatpush1.bf16.msra.mxu0 %v520
    %586 = vmatprep.subr.bf16.mxu0 %v523
    %587 = vmatpush1.bf16.msra.mxu0 %v522
    %588 = vmatprep.subr.bf16.mxu0 %v525
    %589 = vmatpush1.bf16.msra.mxu0 %v524
    %590 = vmatprep.subr.bf16.mxu0 %v527
    %591 = vmatpush1.bf16.msra.mxu0 %v526
    %592 = vmatprep.subr.bf16.mxu0 %v529
    %593 = vmatpush1.bf16.msra.mxu0 %v528
    %594 = vmatprep.subr.bf16.mxu0 %v531
    %595 = vmatpush1.bf16.msra.mxu0 %v530
    %596 = vmatprep.subr.bf16.mxu0 %v533
    %597 = vmatpush1.bf16.msra.mxu0 %v532
    %598 = vmatprep.subr.bf16.mxu0 %v535
    %599 = vmatpush1.bf16.msra.mxu0 %v534
    %600 = vmatprep.subr.bf16.mxu0 %v537
    %601 = vmatpush1.bf16.msra.mxu0 %v536
    %602 = vmatprep.subr.bf16.mxu0 %v539
    %603 = vmatpush1.bf16.msra.mxu0 %v538
    %604 = vmatprep.mubr.bf16.mxu0 %v365
    %605 = vmatmul.mubr.bf16.gmra.mrb[0].mxu0 %v364
    %v606 = vpop.f32.mrb[0].mxu0
    %v607 = vadd.f32 %v405, %v606
    %v608 = vpop.f32.mrb[0].mxu0
    %v609 = vadd.f32 %v409, %v608
    %v610 = vpop.f32.mrb[0].mxu0
    %v611 = vpop.f32.mrb[0].mxu0
    %612 = vdwg.mxu0
    %v613 = vmax.f32 %v607, 0.0
    %v614 = vmax.f32 %v609, 0.0
    %s615 = scalar_lea.vmem [#allocation7], 256
    %v616 = vld [vmem:[%s615] sm:$0xff]
    %v617 = vld [vmem:[%s615 + $0x8] sm:$0xff]
    %v618 = vld [vmem:[%s615 + $0x10] sm:$0xff]
    %v619 = vld [vmem:[%s615 + $0x18] sm:$0xff]
    %v620 = vld [vmem:[%s615 + $0x20] sm:$0xff]
    %v621 = vld [vmem:[%s615 + $0x28] sm:$0xff]
    %v622 = vld [vmem:[%s615 + $0x30] sm:$0xff]
    %v623 = vld [vmem:[%s615 + $0x38] sm:$0xff]
    %v624 = vld [vmem:[%s615 + $0x40] sm:$0xff]
    %v625 = vld [vmem:[%s615 + $0x48] sm:$0xff]
    %v626 = vld [vmem:[%s615 + $0x50] sm:$0xff]
    %v627 = vld [vmem:[%s615 + $0x58] sm:$0xff]
    %v628 = vld [vmem:[%s615 + $0x60] sm:$0xff]
    %v629 = vld [vmem:[%s615 + $0x68] sm:$0xff]
    %v630 = vld [vmem:[%s615 + $0x70] sm:$0xff]
    %v631 = vld [vmem:[%s615 + $0x78] sm:$0xff]
    %v632 = vld [vmem:[%s615 + $0x80] sm:$0xff]
    %v633 = vld [vmem:[%s615 + $0x88] sm:$0xff]
    %v634 = vld [vmem:[%s615 + $0x90] sm:$0xff]
    %v635 = vld [vmem:[%s615 + $0x98] sm:$0xff]
    %v636 = vld [vmem:[%s615 + $0xa0] sm:$0xff]
    %v637 = vld [vmem:[%s615 + $0xa8] sm:$0xff]
    %v638 = vld [vmem:[%s615 + $0xb0] sm:$0xff]
    %v639 = vld [vmem:[%s615 + $0xb8] sm:$0xff]
    %v640 = vld [vmem:[%s615 + $0xc0] sm:$0xff]
    %v641 = vld [vmem:[%s615 + $0xc8] sm:$0xff]
    %v642 = vld [vmem:[%s615 + $0xd0] sm:$0xff]
    %v643 = vld [vmem:[%s615 + $0xd8] sm:$0xff]
    %v644 = vld [vmem:[%s615 + $0xe0] sm:$0xff]
    %v645 = vld [vmem:[%s615 + $0xe8] sm:$0xff]
    %v646 = vld [vmem:[%s615 + $0xf0] sm:$0xff]
    %v647 = vld [vmem:[%s615 + $0xf8] sm:$0xff]
    %s648 = scalar_lea.vmem [#allocation9], 1
    %v649 = vld [vmem:[%s648] ss:$2 sm:$0x3]
    %v651 = vlaneseq
    %v652 = vshrl.u32 %v651, 7
    %v653 = vsub.s32 0, %v652
    %v654 = vrot.slane %v649, %v653
    %v655 = vlaneseq
    %v656 = vshrl.u32 %v655, 7
    %v657 = vsub.s32 1, %v656
    %v658 = vrot.slane %v649, %v657
    %v693 = vunpack.c.l.b16 %v616
    %v694 = vunpack.c.h.b16 %v616
    %v695 = vunpack.c.l.b16 %v617
    %v696 = vunpack.c.h.b16 %v617
    %v697 = vunpack.c.l.b16 %v618
    %v698 = vunpack.c.h.b16 %v618
    %v699 = vunpack.c.l.b16 %v619
    %v700 = vunpack.c.h.b16 %v619
    %v701 = vunpack.c.l.b16 %v620
    %v702 = vunpack.c.h.b16 %v620
    %v703 = vunpack.c.l.b16 %v621
    %v704 = vunpack.c.h.b16 %v621
    %v705 = vunpack.c.l.b16 %v622
    %v706 = vunpack.c.h.b16 %v622
    %v707 = vunpack.c.l.b16 %v623
    %v708 = vunpack.c.h.b16 %v623
    %v709 = vunpack.c.l.b16 %v624
    %v710 = vunpack.c.h.b16 %v624
    %v711 = vunpack.c.l.b16 %v625
    %v712 = vunpack.c.h.b16 %v625
    %v713 = vunpack.c.l.b16 %v626
    %v714 = vunpack.c.h.b16 %v626
    %v715 = vunpack.c.l.b16 %v627
    %v716 = vunpack.c.h.b16 %v627
    %v717 = vunpack.c.l.b16 %v628
    %v718 = vunpack.c.h.b16 %v628
    %v719 = vunpack.c.l.b16 %v629
    %v720 = vunpack.c.h.b16 %v629
    %v721 = vunpack.c.l.b16 %v630
    %v722 = vunpack.c.h.b16 %v630
    %v723 = vunpack.c.l.b16 %v631
    %v724 = vunpack.c.h.b16 %v631
    %v725 = vunpack.c.l.b16 %v632
    %v726 = vunpack.c.h.b16 %v632
    %v727 = vunpack.c.l.b16 %v633
    %v728 = vunpack.c.h.b16 %v633
    %v729 = vunpack.c.l.b16 %v634
    %v730 = vunpack.c.h.b16 %v634
    %v731 = vunpack.c.l.b16 %v635
    %v732 = vunpack.c.h.b16 %v635
    %v733 = vunpack.c.l.b16 %v636
    %v734 = vunpack.c.h.b16 %v636
    %v735 = vunpack.c.l.b16 %v637
    %v736 = vunpack.c.h.b16 %v637
    %v737 = vunpack.c.l.b16 %v638
    %v738 = vunpack.c.h.b16 %v638
    %v739 = vunpack.c.l.b16 %v639
    %v740 = vunpack.c.h.b16 %v639
    %v741 = vunpack.c.l.b16 %v640
    %v742 = vunpack.c.h.b16 %v640
    %v743 = vunpack.c.l.b16 %v641
    %v744 = vunpack.c.h.b16 %v641
    %v745 = vunpack.c.l.b16 %v642
    %v746 = vunpack.c.h.b16 %v642
    %v747 = vunpack.c.l.b16 %v643
    %v748 = vunpack.c.h.b16 %v643
    %v749 = vunpack.c.l.b16 %v644
    %v750 = vunpack.c.h.b16 %v644
    %v751 = vunpack.c.l.b16 %v645
    %v752 = vunpack.c.h.b16 %v645
    %v753 = vunpack.c.l.b16 %v646
    %v754 = vunpack.c.h.b16 %v646
    %v755 = vunpack.c.l.b16 %v647
    %v756 = vunpack.c.h.b16 %v647
    %v757 = vpack.c.b16 %v695, %v693
    %v758 = vpack.c.b16 %v696, %v694
    %v759 = vpack.c.b16 %v699, %v697
    %v760 = vpack.c.b16 %v700, %v698
    %v761 = vpack.c.b16 %v703, %v701
    %v762 = vpack.c.b16 %v704, %v702
    %v763 = vpack.c.b16 %v707, %v705
    %v764 = vpack.c.b16 %v708, %v706
    %v765 = vpack.c.b16 %v711, %v709
    %v766 = vpack.c.b16 %v712, %v710
    %v767 = vpack.c.b16 %v715, %v713
    %v768 = vpack.c.b16 %v716, %v714
    %v769 = vpack.c.b16 %v719, %v717
    %v770 = vpack.c.b16 %v720, %v718
    %v771 = vpack.c.b16 %v723, %v721
    %v772 = vpack.c.b16 %v724, %v722
    %v773 = vpack.c.b16 %v727, %v725
    %v774 = vpack.c.b16 %v728, %v726
    %v775 = vpack.c.b16 %v731, %v729
    %v776 = vpack.c.b16 %v732, %v730
    %v777 = vpack.c.b16 %v735, %v733
    %v778 = vpack.c.b16 %v736, %v734
    %v779 = vpack.c.b16 %v739, %v737
    %v780 = vpack.c.b16 %v740, %v738
    %v781 = vpack.c.b16 %v743, %v741
    %v782 = vpack.c.b16 %v744, %v742
    %v783 = vpack.c.b16 %v747, %v745
    %v784 = vpack.c.b16 %v748, %v746
    %v785 = vpack.c.b16 %v751, %v749
    %v786 = vpack.c.b16 %v752, %v750
    %v787 = vpack.c.b16 %v755, %v753
    %v788 = vpack.c.b16 %v756, %v754
    %821 = vmatprep.subr.bf16.mxu0 %v758
    %822 = vmatpush1.bf16.msra.mxu0 %v757
    %823 = vmatprep.subr.bf16.mxu0 %v760
    %824 = vmatpush1.bf16.msra.mxu0 %v759
    %825 = vmatprep.subr.bf16.mxu0 %v762
    %826 = vmatpush1.bf16.msra.mxu0 %v761
    %827 = vmatprep.subr.bf16.mxu0 %v764
    %828 = vmatpush1.bf16.msra.mxu0 %v763
    %829 = vmatprep.subr.bf16.mxu0 %v766
    %830 = vmatpush1.bf16.msra.mxu0 %v765
    %831 = vmatprep.subr.bf16.mxu0 %v768
    %832 = vmatpush1.bf16.msra.mxu0 %v767
    %833 = vmatprep.subr.bf16.mxu0 %v770
    %834 = vmatpush1.bf16.msra.mxu0 %v769
    %835 = vmatprep.subr.bf16.mxu0 %v772
    %836 = vmatpush1.bf16.msra.mxu0 %v771
    %837 = vmatprep.subr.bf16.mxu0 %v774
    %838 = vmatpush1.bf16.msra.mxu0 %v773
    %839 = vmatprep.subr.bf16.mxu0 %v776
    %840 = vmatpush1.bf16.msra.mxu0 %v775
    %841 = vmatprep.subr.bf16.mxu0 %v778
    %842 = vmatpush1.bf16.msra.mxu0 %v777
    %843 = vmatprep.subr.bf16.mxu0 %v780
    %844 = vmatpush1.bf16.msra.mxu0 %v779
    %845 = vmatprep.subr.bf16.mxu0 %v782
    %846 = vmatpush1.bf16.msra.mxu0 %v781
    %847 = vmatprep.subr.bf16.mxu0 %v784
    %848 = vmatpush1.bf16.msra.mxu0 %v783
    %849 = vmatprep.subr.bf16.mxu0 %v786
    %850 = vmatpush1.bf16.msra.mxu0 %v785
    %851 = vmatprep.subr.bf16.mxu0 %v788
    %852 = vmatpush1.bf16.msra.mxu0 %v787
    %853 = vmatprep.mubr.bf16.mxu0 %v367
    %854 = vmatmul.mubr.bf16.gmra.mrb[0].mxu0 %v366
    %v855 = vpop.f32.mrb[0].mxu0
    %v856 = vadd.f32 %v654, %v855
    %v857 = vpop.f32.mrb[0].mxu0
    %v858 = vadd.f32 %v658, %v857
    %v859 = vpop.f32.mrb[0].mxu0
    %v860 = vpop.f32.mrb[0].mxu0
    %861 = vdwg.mxu0
    %v862 = vmax.f32 %v856, 0.0
    %v863 = vmax.f32 %v858, 0.0
    %v864 = vld [vmem:[%s7] ss:$2 sm:$0x3]
    %v866 = vlaneseq
    %v867 = vshrl.u32 %v866, 7
    %v868 = vsub.s32 0, %v867
    %v869 = vrot.slane %v864, %v868
    %v870 = vlaneseq
    %v871 = vshrl.u32 %v870, 7
    %v872 = vsub.s32 1, %v871
    %v873 = vrot.slane %v864, %v872
    %v876 = vmul.f32 %v613, %v869
    %v877 = vmul.f32 %v614, %v873
    %v878 = vadd.f32 %v876, %v877
    %879 = vadd.xlane.f32.xlu0 %v878
    %v880 = vpop.xlane.xlu0 %879
    %v881 = vld [vmem:[%s8] sm:$0x1]
    %v883 = vlaneseq
    %v884 = vshrl.u32 %v883, 7
    %v885 = vsub.s32 0, %v884
    %v886 = vrot.slane %v881, %v885
    %v888 = vadd.f32 %v880, %v886
    %s889 = scalar_lea.vmem %s7, 1
    %v890 = vld [vmem:[%s889] ss:$2 sm:$0x3]
    %v892 = vlaneseq
    %v893 = vshrl.u32 %v892, 7
    %v894 = vsub.s32 0, %v893
    %v895 = vrot.slane %v890, %v894
    %v896 = vlaneseq
    %v897 = vshrl.u32 %v896, 7
    %v898 = vsub.s32 1, %v897
    %v899 = vrot.slane %v890, %v898
    %v902 = vmul.f32 %v862, %v895
    %v903 = vmul.f32 %v863, %v899
    %v904 = vadd.f32 %v902, %v903
    %905 = vadd.xlane.f32.xlu0 %v904
    %v906 = vpop.xlane.xlu0 %905
    %v907 = vadd.f32 %v906, %v886
    %vm908 = vcmask 7168
    %v909 = vsel %vm908, %v888, %v907
    %vm910 = vcmask 15360
    %911 = vst.msk [vmem:[%s9] sm:$0xff] %vm910, %v909
    // Predicated region
    $region58: #{qnetwork_forward.1} parent=1 // pred_check
      _
    $region59: #{qnetwork_forward.1} parent=1 // pred_check_branch
      %913 = sbr.rel (0) target = $region61
    $region60: #{qnetwork_forward.1} parent=1 // pred_region
      _
    $region61: #{qnetwork_forward.1} parent=1 // pred_fallthru
      _
    // Predicated region
    $region62: #{qnetwork_forward.1} parent=1 // pred_check
      _
    $region63: #{qnetwork_forward.1} parent=1 // pred_check_branch
      %915 = sbr.rel (0) target = $region65
    $region64: #{qnetwork_forward.1} parent=1 // pred_region
      _
    $region65: #{qnetwork_forward.1} parent=1 // pred_fallthru
      _
    %916 = vsyncpa [#allocation3], 1
    %917 = vsyncpa [#allocation5], 1
    %918 = vsyncpa [#allocation8], 1

</llo_original>
